<compile_context>
chip_gen: v7x
topology: tpu7x:2x2x1
jax: 0.10.0
libtpu: 0.0.40
codegen_flags: <defaults>
</compile_context>

<pallas_src>
import jax
import jax.numpy as jnp
from jax import lax
from jax.experimental import pallas as pl
from jax.experimental.pallas import tpu as pltpu


# ---------------------------------------------------------------------------
# BN folding + host-side glue (im2col for conv1, per-band halo patches)
# ---------------------------------------------------------------------------
def fold_bn(gamma, beta, mean, var, eps=1e-5):
    scale = gamma / jnp.sqrt(var + eps)
    bias = beta - mean * scale
    return scale, bias                                    # (F,), (F,)


def im2col_cf(x_nchw, ksize, stride, pad):
    """Channels-first im2col: (N,C,H,W) -> (N, k*k*C, Ho*Wo); K order (dh,dw,c)."""
    N, C, H, W = x_nchw.shape
    xp = jnp.pad(x_nchw, ((0, 0), (0, 0), (pad, pad), (pad, pad)))
    Ho = (H + 2 * pad - ksize) // stride + 1
    Wo = (W + 2 * pad - ksize) // stride + 1
    cols = []
    for dh in range(ksize):
        for dw in range(ksize):
            sl = lax.slice(
                xp, (0, 0, dh, dw),
                (N, C, dh + (Ho - 1) * stride + 1, dw + (Wo - 1) * stride + 1),
                (1, 1, stride, stride))
            cols.append(sl)                                # (N, C, Ho, Wo)
    p = jnp.concatenate(cols, axis=1)                      # (N, 9C, Ho, Wo)
    return p.reshape(N, ksize * ksize * C, Ho * Wo), (Ho, Wo)


def _round_up(x, m):
    return -(-x // m) * m


def _pick_band_rows(Ho, Wo, Cin, F_, out_itemsize, budget, max_band_rows=None):
    """Largest divisor of Ho whose band fits the VMEM budget (128-lane aligned)."""
    K1 = 9 * Cin
    fixed = 2 * ((2 * F_ * K1 + 9 * F_ * F_) * 2 + 3 * F_ * 4)     # weights+biases (x2 buf)
    cands = [d for d in range(1, Ho + 1)
             if Ho % d == 0 and (d == Ho or (d * Wo) % 128 == 0)]
    if max_band_rows is not None:
        limited = [d for d in cands if d <= max_band_rows]
        cands = limited or cands
    for tho in sorted(cands, reverse=True):
        sb = tho * Wo
        P = _round_up(Wo + 1, 128)
        hbuf = F_ * (P + sb + Wo + 1) * 2
        blocks = 2 * (K1 * sb * 2 + K1 * 2 * Wo * 2
                      + F_ * sb * out_itemsize + 2 * sb * 2)       # double-buffered
        temps = (8 + 18 + 8) * F_ * sb                             # z / hcat / acc
        if fixed + hbuf + blocks + temps <= budget:
            return tho
    raise ValueError(
        "downBlock Pallas kernel: even the smallest row band does not fit the "
        f"VMEM budget ({budget} bytes); shrink the layer or raise the budget.")


# ---------------------------------------------------------------------------
# Fused Pallas kernel (one grid step == one row band of one image)
# ---------------------------------------------------------------------------
def _make_kernel(F_, S_band, Wo, P, NB):
    def kernel(pc_ref, ph_ref, wc_ref, w2_ref, b1_ref, b2_ref, bd_ref,
               mask_ref, o_ref, hbuf):
        b = pl.program_id(1)

        # ---- conv1 (3x3,s2) + direct (folded pool+1x1): one MXU contraction
        z = jnp.dot(wc_ref[...], pc_ref[0],
                    preferred_element_type=jnp.float32)            # (2F, S_band)
        h = z[:F_] + b1_ref[...]
        h = jnp.where(h > 0, h, 0.2 * h)                           # conv1 act
        y2 = z[F_:] + bd_ref[...]
        y2 = jnp.where(y2 > 0, y2, 0.2 * y2)                       # direct act

        # ---- conv1 on the two halo rows (forced to zero at image top/bottom)
        zh = jnp.dot(wc_ref[...], ph_ref[0, 0],
                     preferred_element_type=jnp.float32)           # (2F, 2*Wo)
        up_flag = (b > 0).astype(jnp.float32)
        dn_flag = (b < NB - 1).astype(jnp.float32)
        h_up = zh[:F_, 0:Wo] + b1_ref[...]
        h_up = jnp.where(h_up > 0, h_up, 0.2 * h_up) * up_flag
        h_dn = zh[:F_, Wo:2 * Wo] + b1_ref[...]
        h_dn = jnp.where(h_dn > 0, h_dn, 0.2 * h_dn) * dn_flag

        # ---- stage band + halo rows in the flat, zero-cornered VMEM scratch
        zcol = jnp.zeros((F_, 1), jnp.bfloat16)
        hbuf[:, P - Wo - 1:P] = jnp.concatenate(
            [zcol, h_up.astype(jnp.bfloat16)], axis=1)
        hbuf[:, P:P + S_band] = h.astype(jnp.bfloat16)
        hbuf[:, P + S_band:P + S_band + Wo + 1] = jnp.concatenate(
            [h_dn.astype(jnp.bfloat16), zcol], axis=1)

        # ---- conv2 (3x3,s1,p1): one fat (F,9F)x(9F,S_band) contraction.
        # 3x3 taps are 9 shifted flat slices of the scratch; bf16 lane masks
        # remove the column wrap at row boundaries.
        taps = []
        for dh in range(3):
            for dw in range(3):
                off = P + (dh - 1) * Wo + (dw - 1)
                hs = hbuf[:, off:off + S_band]                     # (F, S_band) bf16
                if dw == 0:
                    hs = hs * mask_ref[0:1, :]
                elif dw == 2:
                    hs = hs * mask_ref[1:2, :]
                taps.append(hs)
        hcat = jnp.concatenate(taps, axis=0)                       # (9F, S_band)
        y1 = jnp.dot(w2_ref[...], hcat,
                     preferred_element_type=jnp.float32) + b2_ref[...]
        y1 = jnp.where(y1 > 0, y1, 0.2 * y1)

        o_ref[0] = ((y1 + y2) * 0.5).astype(o_ref.dtype)
    return kernel


# ---------------------------------------------------------------------------
# Wrapper
# ---------------------------------------------------------------------------
def down_block(x_nchw, w1, bn1, w2, bn2, wd, bnd, *,
               out_dtype=jnp.bfloat16, max_band_rows=None):
    N, Cin, H, W = x_nchw.shape
    F_ = w1.shape[0]
    assert w1.shape == (F_, Cin, 3, 3) and w2.shape == (F_, F_, 3, 3)
    assert wd.shape == (F_, Cin, 1, 1)
    assert H % 2 == 0 and W % 2 == 0, "downBlock expects even H and W"
    Ho, Wo = H // 2, W // 2
    S = Ho * Wo
    K1 = 9 * Cin

    # ---- generation-aware VMEM budget (75% of physical; 64 MiB v7x fallback)
    try:
        info = pltpu.get_tpu_info()
        vmem_cap = int(getattr(info, "vmem_capacity_bytes", 64 * 2 ** 20))
    except Exception:
        vmem_cap = 64 * 2 ** 20
    vmem_budget = (vmem_cap * 3) // 4

    out_itemsize = jnp.dtype(out_dtype).itemsize
    tho = _pick_band_rows(Ho, Wo, Cin, F_, out_itemsize, vmem_budget, max_band_rows)
    NB = Ho // tho
    S_band = tho * Wo
    P = _round_up(Wo + 1, 128)            # 128-aligned start of the band in hbuf
    HBUF_W = P + S_band + Wo + 1

    # ---- fold inference-mode BN into weights / per-channel biases ----------
    s1, b1 = fold_bn(*bn1)
    s2, b2 = fold_bn(*bn2)
    sd, bd = fold_bn(*bnd)
    w1m = jnp.transpose(w1, (0, 2, 3, 1)).reshape(F_, K1) * s1[:, None]
    wd2 = wd.reshape(F_, Cin) * sd[:, None] * 0.25
    wdir = jnp.zeros((F_, 9, Cin), jnp.float32)
    for t in (4, 5, 7, 8):                # conv1 taps (1,1),(1,2),(2,1),(2,2) == 2x2 pool
        wdir = wdir.at[:, t].set(wd2)
    wc = jnp.concatenate([w1m, wdir.reshape(F_, K1)], axis=0).astype(jnp.bfloat16)
    w2m = jnp.transpose(w2 * s2[:, None, None, None],
                        (0, 2, 3, 1)).reshape(F_, 9 * F_).astype(jnp.bfloat16)
    b1c = b1.reshape(F_, 1).astype(jnp.float32)
    b2c = b2.reshape(F_, 1).astype(jnp.float32)
    bdc = bd.reshape(F_, 1).astype(jnp.float32)

    # ---- conv1 patches: bf16 BEFORE im2col (halves the expansion traffic) --
    xb = x_nchw.astype(jnp.bfloat16)
    p1, _ = im2col_cf(xb, ksize=3, stride=2, pad=1)                 # (N, K1, S)

    # ---- per-band halo patches (one conv1 output row above / below) --------
    p1_4d = p1.reshape(N, K1, Ho, Wo)
    zero_row = jnp.zeros((N, K1, Wo), jnp.bfloat16)
    halos = []
    for bidx in range(NB):
        ai = bidx * tho - 1
        bi = (bidx + 1) * tho
        ar = p1_4d[:, :, ai, :] if ai >= 0 else zero_row
        br = p1_4d[:, :, bi, :] if bi < Ho else zero_row
        halos.append(jnp.concatenate([ar, br], axis=-1))            # (N, K1, 2Wo)
    phalo = jnp.stack(halos, axis=1)                                # (N, NB, K1, 2Wo)

    # ---- column-wrap masks for the flat 3x3 shift trick (bf16) -------------
    col = jnp.arange(S_band, dtype=jnp.int32) % Wo
    masks = jnp.stack([(col != 0), (col != Wo - 1)]).astype(jnp.bfloat16)

    # ---- scheduler hints ----------------------------------------------------
    flops = 2 * N * S * (2 * F_ * K1 + 9 * F_ * F_)
    bytes_accessed = (N * (K1 * S * 2 + NB * K1 * 2 * Wo * 2 + F_ * S * out_itemsize)
                      + (2 * F_ * K1 + 9 * F_ * F_) * 2 + 3 * F_ * 4 + 2 * S_band * 2)

    kernel = _make_kernel(F_, S_band, Wo, P, NB)
    out = pl.pallas_call(
        kernel,
        out_shape=jax.ShapeDtypeStruct((N, F_, S), out_dtype),
        grid_spec=pltpu.PrefetchScalarGridSpec(
            num_scalar_prefetch=0,
            grid=(N, NB),
            in_specs=[
                pl.BlockSpec((1, K1, S_band), lambda n, b: (n, 0, b)),     # patches
                pl.BlockSpec((1, 1, K1, 2 * Wo), lambda n, b: (n, b, 0, 0)),  # halo patches
                pl.BlockSpec((2 * F_, K1), lambda n, b: (0, 0)),           # [W1;Wd] folded
                pl.BlockSpec((F_, 9 * F_), lambda n, b: (0, 0)),           # W2 folded
                pl.BlockSpec((F_, 1), lambda n, b: (0, 0)),                # b1
                pl.BlockSpec((F_, 1), lambda n, b: (0, 0)),                # b2
                pl.BlockSpec((F_, 1), lambda n, b: (0, 0)),                # bd
                pl.BlockSpec((2, S_band), lambda n, b: (0, 0)),            # wrap masks
            ],
            out_specs=pl.BlockSpec((1, F_, S_band), lambda n, b: (n, 0, b)),
            scratch_shapes=[pltpu.VMEM((F_, HBUF_W), jnp.bfloat16)],
        ),
        compiler_params=pltpu.CompilerParams(
            dimension_semantics=("parallel", "parallel"),
            vmem_limit_bytes=int(vmem_budget)),
        cost_estimate=pl.CostEstimate(
            flops=flops, transcendentals=0, bytes_accessed=bytes_accessed),
    )(p1, phalo, wc, w2m, b1c, b2c, bdc, masks)

    return out.reshape(N, F_, Ho, Wo)          # channels-first: no final transpose


# ---------------------------------------------------------------------------
# Pure-JAX reference (sanity check of the Pallas path)
# ---------------------------------------------------------------------------
def ref_down_block(x_nchw, w1, bn1, w2, bn2, wd, bnd):
    x = jnp.transpose(x_nchw, (0, 2, 3, 1)).astype(jnp.float32)

    def conv(xx, w, stride, pad):
        wh = jnp.transpose(w, (2, 3, 1, 0))    # OIHW -> HWIO
        return lax.conv_general_dilated(
            xx, wh, (stride, stride), ((pad, pad), (pad, pad)),
            dimension_numbers=('NHWC', 'HWIO', 'NHWC'))

    def bn_lrelu(xx, params):
        s, b = fold_bn(*params)
        y = xx * s.reshape(1, 1, 1, -1) + b.reshape(1, 1, 1, -1)
        return jnp.where(y > 0, y, 0.2 * y)

    h = bn_lrelu(conv(x, w1, 2, 1), bn1)
    x1 = bn_lrelu(conv(h, w2, 1, 1), bn2)
    N, H, W, C = x.shape
    pooled = x.reshape(N, H // 2, 2, W // 2, 2, C).mean(axis=(2, 4))
    x2 = bn_lrelu(conv(pooled, wd, 1, 0), bnd)
    out = (x1 + x2) / 2
    return jnp.transpose(out, (0, 3, 1, 2))


# ---------------------------------------------------------------------------
if __name__ == "__main__":
    key = jax.random.PRNGKey(0)

    def bn_params(k, F_):
        k1, k2, k3, k4 = jax.random.split(k, 4)
        gamma = 1.0 + 0.1 * jax.random.normal(k1, (F_,), jnp.float32)
        beta = 0.1 * jax.random.normal(k2, (F_,), jnp.float32)
        mean = 0.1 * jax.random.normal(k3, (F_,), jnp.float32)
        var = 0.5 + jnp.abs(jax.random.normal(k4, (F_,), jnp.float32))
        return gamma, beta, mean, var

    def make_case(k, N, Cin, H, W):
        F_ = 2 * Cin
        ks = jax.random.split(k, 7)
        x = jax.random.normal(ks[0], (N, Cin, H, W), jnp.float32)
        w1 = 0.2 * jax.random.normal(ks[1], (F_, Cin, 3, 3), jnp.float32)
        w2 = 0.2 * jax.random.normal(ks[2], (F_, F_, 3, 3), jnp.float32)
        wd = 0.2 * jax.random.normal(ks[3], (F_, Cin, 1, 1), jnp.float32)
        return (x, w1, bn_params(ks[4], F_), w2, bn_params(ks[5], F_),
                wd, bn_params(ks[6], F_))

    k1, k2 = jax.random.split(key, 2)

    # case 1: small map -> single row band (filters//2 == 4, filters == 8)
    args1 = make_case(k1, N=2, Cin=4, H=16, W=16)
    out1 = jax.block_until_ready(down_block(*args1))
    assert out1.shape == (2, 8, 8, 8), out1.shape
    ref1 = ref_down_block(*args1)
    err1 = float(jnp.max(jnp.abs(out1.astype(jnp.float32) - ref1)))
    if err1 > 1.5e-1:
        raise AssertionError(f"case1 mismatch vs reference, max abs err = {err1}")

    # case 2: forces 2 row bands -> exercises the conv2 halo / mask logic
    args2 = make_case(k2, N=2, Cin=4, H=32, W=32)
    out2 = jax.block_until_ready(down_block(*args2, max_band_rows=8))
    assert out2.shape == (2, 8, 16, 16), out2.shape
    ref2 = ref_down_block(*args2)
    err2 = float(jnp.max(jnp.abs(out2.astype(jnp.float32) - ref2)))
    if err2 > 1.5e-1:
        raise AssertionError(f"case2 mismatch vs reference, max abs err = {err2}")

    print("KERNEL_OK")
</pallas_src>

<mosaic_0001>
module attributes {stable_mosaic.version = 11 : i64} {
  func.func @kernel(%arg0: i32, %arg1: i32, %arg2: memref<1x36x64xbf16, #tpu.memory_space<vmem>>, %arg3: memref<1x1x36x16xbf16, #tpu.memory_space<vmem>>, %arg4: memref<16x36xbf16, #tpu.memory_space<vmem>>, %arg5: memref<8x72xbf16, #tpu.memory_space<vmem>>, %arg6: memref<8x1xf32, #tpu.memory_space<vmem>>, %arg7: memref<8x1xf32, #tpu.memory_space<vmem>>, %arg8: memref<8x1xf32, #tpu.memory_space<vmem>>, %arg9: memref<2x64xbf16, #tpu.memory_space<vmem>>, %arg10: memref<1x8x64xbf16, #tpu.memory_space<vmem>>, %arg11: memref<8x201xbf16, #tpu.memory_space<vmem>>) attributes {dimension_semantics = [#tpu.dimension_semantics<parallel>, #tpu.dimension_semantics<parallel>], iteration_bounds = array<i64: 2, 1>, scalar_prefetch = 0 : i64, scratch_operands = 1 : i64, tpu.core_type = #tpu.core_type<tc>, window_params = [{transform_indices = @transform_0, window_bounds = array<i64: 1, 36, 64>}, {transform_indices = @transform_1, window_bounds = array<i64: 1, 1, 36, 16>}, {pipeline_mode = #tpu.pipeline_mode<synchronous>, transform_indices = @transform_2, window_bounds = array<i64: 16, 36>}, {pipeline_mode = #tpu.pipeline_mode<synchronous>, transform_indices = @transform_3, window_bounds = array<i64: 8, 72>}, {pipeline_mode = #tpu.pipeline_mode<synchronous>, transform_indices = @transform_4, window_bounds = array<i64: 8, 1>}, {pipeline_mode = #tpu.pipeline_mode<synchronous>, transform_indices = @transform_5, window_bounds = array<i64: 8, 1>}, {pipeline_mode = #tpu.pipeline_mode<synchronous>, transform_indices = @transform_6, window_bounds = array<i64: 8, 1>}, {pipeline_mode = #tpu.pipeline_mode<synchronous>, transform_indices = @transform_7, window_bounds = array<i64: 2, 64>}, {transform_indices = @transform_8, window_bounds = array<i64: 1, 8, 64>}]} {
    %c0 = arith.constant 0 : index
    %c0_0 = arith.constant 0 : index
    %0 = vector.load %arg4[%c0, %c0_0] : memref<16x36xbf16, #tpu.memory_space<vmem>>, vector<16x36xbf16>
    %c0_1 = arith.constant 0 : index
    %c0_2 = arith.constant 0 : index
    %c0_3 = arith.constant 0 : index
    %1 = vector.load %arg2[%c0_1, %c0_2, %c0_3] : memref<1x36x64xbf16, #tpu.memory_space<vmem>>, vector<1x36x64xbf16>
    %2 = vector.shape_cast %1 : vector<1x36x64xbf16> to vector<36x64xbf16>
    %cst = arith.constant dense<0.000000e+00> : vector<16x64xf32>
    %3 = tpu.matmul %0, %2, %cst {dimension_numbers = #tpu.dot_dimension_numbers<[1], [0], [0], [1], [0, 0, 1, 1], [], []>} : vector<16x36xbf16>, vector<36x64xbf16>, vector<16x64xf32> -> vector<16x64xf32>
    %4 = vector.extract_strided_slice %3 {offsets = [0, 0], sizes = [8, 64], strides = [1, 1]} : vector<16x64xf32> to vector<8x64xf32>
    %c0_4 = arith.constant 0 : index
    %c0_5 = arith.constant 0 : index
    %5 = vector.load %arg6[%c0_4, %c0_5] : memref<8x1xf32, #tpu.memory_space<vmem>>, vector<8x1xf32>
    %6 = vector.broadcast %5 : vector<8x1xf32> to vector<8x64xf32>
    %7 = arith.addf %4, %6 : vector<8x64xf32>
    %cst_6 = arith.constant 0.000000e+00 : f32
    %8 = vector.broadcast %cst_6 : f32 to vector<8x64xf32>
    %9 = arith.cmpf ogt, %7, %8 : vector<8x64xf32>
    %cst_7 = arith.constant 2.000000e-01 : f32
    %10 = vector.broadcast %cst_7 : f32 to vector<8x64xf32>
    %11 = arith.mulf %10, %7 : vector<8x64xf32>
    %12 = arith.select %9, %7, %11 : vector<8x64xi1>, vector<8x64xf32>
    %13 = vector.extract_strided_slice %3 {offsets = [8, 0], sizes = [8, 64], strides = [1, 1]} : vector<16x64xf32> to vector<8x64xf32>
    %c0_8 = arith.constant 0 : index
    %c0_9 = arith.constant 0 : index
    %14 = vector.load %arg8[%c0_8, %c0_9] : memref<8x1xf32, #tpu.memory_space<vmem>>, vector<8x1xf32>
    %15 = vector.broadcast %14 : vector<8x1xf32> to vector<8x64xf32>
    %16 = arith.addf %13, %15 : vector<8x64xf32>
    %cst_10 = arith.constant 0.000000e+00 : f32
    %17 = vector.broadcast %cst_10 : f32 to vector<8x64xf32>
    %18 = arith.cmpf ogt, %16, %17 : vector<8x64xf32>
    %cst_11 = arith.constant 2.000000e-01 : f32
    %19 = vector.broadcast %cst_11 : f32 to vector<8x64xf32>
    %20 = arith.mulf %19, %16 : vector<8x64xf32>
    %21 = arith.select %18, %16, %20 : vector<8x64xi1>, vector<8x64xf32>
    %c0_12 = arith.constant 0 : index
    %c0_13 = arith.constant 0 : index
    %22 = vector.load %arg4[%c0_12, %c0_13] : memref<16x36xbf16, #tpu.memory_space<vmem>>, vector<16x36xbf16>
    %c0_14 = arith.constant 0 : index
    %c0_15 = arith.constant 0 : index
    %c0_16 = arith.constant 0 : index
    %c0_17 = arith.constant 0 : index
    %23 = vector.load %arg3[%c0_14, %c0_15, %c0_16, %c0_17] : memref<1x1x36x16xbf16, #tpu.memory_space<vmem>>, vector<1x1x36x16xbf16>
    %24 = vector.shape_cast %23 : vector<1x1x36x16xbf16> to vector<36x16xbf16>
    %cst_18 = arith.constant dense<0.000000e+00> : vector<16x16xf32>
    %25 = tpu.matmul %22, %24, %cst_18 {dimension_numbers = #tpu.dot_dimension_numbers<[1], [0], [0], [1], [0, 0, 1, 1], [], []>} : vector<16x36xbf16>, vector<36x16xbf16>, vector<16x16xf32> -> vector<16x16xf32>
    %c0_i32 = arith.constant 0 : i32
    %26 = arith.cmpi sgt, %arg1, %c0_i32 : i32
    %27 = arith.extui %26 : i1 to i32
    %28 = arith.sitofp %27 : i32 to f32
    %c0_i32_19 = arith.constant 0 : i32
    %29 = arith.cmpi slt, %arg1, %c0_i32_19 : i32
    %30 = arith.extui %29 : i1 to i32
    %31 = arith.sitofp %30 : i32 to f32
    %32 = vector.extract_strided_slice %25 {offsets = [0, 0], sizes = [8, 8], strides = [1, 1]} : vector<16x16xf32> to vector<8x8xf32>
    %c0_20 = arith.constant 0 : index
    %c0_21 = arith.constant 0 : index
    %33 = vector.load %arg6[%c0_20, %c0_21] : memref<8x1xf32, #tpu.memory_space<vmem>>, vector<8x1xf32>
    %34 = vector.broadcast %33 : vector<8x1xf32> to vector<8x8xf32>
    %35 = arith.addf %32, %34 : vector<8x8xf32>
    %cst_22 = arith.constant 0.000000e+00 : f32
    %36 = vector.broadcast %cst_22 : f32 to vector<8x8xf32>
    %37 = arith.cmpf ogt, %35, %36 : vector<8x8xf32>
    %cst_23 = arith.constant 2.000000e-01 : f32
    %38 = vector.broadcast %cst_23 : f32 to vector<8x8xf32>
    %39 = arith.mulf %38, %35 : vector<8x8xf32>
    %40 = arith.select %37, %35, %39 : vector<8x8xi1>, vector<8x8xf32>
    %41 = vector.broadcast %28 : f32 to vector<8x8xf32>
    %42 = arith.mulf %40, %41 : vector<8x8xf32>
    %43 = vector.extract_strided_slice %25 {offsets = [0, 8], sizes = [8, 8], strides = [1, 1]} : vector<16x16xf32> to vector<8x8xf32>
    %c0_24 = arith.constant 0 : index
    %c0_25 = arith.constant 0 : index
    %44 = vector.load %arg6[%c0_24, %c0_25] : memref<8x1xf32, #tpu.memory_space<vmem>>, vector<8x1xf32>
    %45 = vector.broadcast %44 : vector<8x1xf32> to vector<8x8xf32>
    %46 = arith.addf %43, %45 : vector<8x8xf32>
    %cst_26 = arith.constant 0.000000e+00 : f32
    %47 = vector.broadcast %cst_26 : f32 to vector<8x8xf32>
    %48 = arith.cmpf ogt, %46, %47 : vector<8x8xf32>
    %cst_27 = arith.constant 2.000000e-01 : f32
    %49 = vector.broadcast %cst_27 : f32 to vector<8x8xf32>
    %50 = arith.mulf %49, %46 : vector<8x8xf32>
    %51 = arith.select %48, %46, %50 : vector<8x8xi1>, vector<8x8xf32>
    %52 = vector.broadcast %31 : f32 to vector<8x8xf32>
    %53 = arith.mulf %51, %52 : vector<8x8xf32>
    %cst_28 = arith.constant 0.000000e+00 : bf16
    %54 = vector.broadcast %cst_28 : bf16 to vector<8x1xbf16>
    %55 = arith.truncf %42 : vector<8x8xf32> to vector<8x8xbf16>
    %56 = tpu.concatenate %54, %55 in 1 : vector<8x1xbf16>, vector<8x8xbf16> -> vector<8x9xbf16>
    %c0_29 = arith.constant 0 : index
    %c119 = arith.constant 119 : index
    %57 = vector.load %arg11[%c0_29, %c119] : memref<8x201xbf16, #tpu.memory_space<vmem>>, vector<8x9xbf16>
    tpu.vector_store %arg11[%c0_29, %c119], %56 {strides = array<i32>} : memref<8x201xbf16, #tpu.memory_space<vmem>>, vector<8x9xbf16>,
    %58 = arith.truncf %12 : vector<8x64xf32> to vector<8x64xbf16>
    %c0_30 = arith.constant 0 : index
    %c128 = arith.constant 128 : index
    %59 = vector.load %arg11[%c0_30, %c128] : memref<8x201xbf16, #tpu.memory_space<vmem>>, vector<8x64xbf16>
    tpu.vector_store %arg11[%c0_30, %c128], %58 {strides = array<i32>} : memref<8x201xbf16, #tpu.memory_space<vmem>>, vector<8x64xbf16>,
    %60 = arith.truncf %53 : vector<8x8xf32> to vector<8x8xbf16>
    %61 = tpu.concatenate %60, %54 in 1 : vector<8x8xbf16>, vector<8x1xbf16> -> vector<8x9xbf16>
    %c0_31 = arith.constant 0 : index
    %c192 = arith.constant 192 : index
    %62 = vector.load %arg11[%c0_31, %c192] : memref<8x201xbf16, #tpu.memory_space<vmem>>, vector<8x9xbf16>
    tpu.vector_store %arg11[%c0_31, %c192], %61 {strides = array<i32>} : memref<8x201xbf16, #tpu.memory_space<vmem>>, vector<8x9xbf16>,
    %c0_32 = arith.constant 0 : index
    %c119_33 = arith.constant 119 : index
    %63 = vector.load %arg11[%c0_32, %c119_33] : memref<8x201xbf16, #tpu.memory_space<vmem>>, vector<8x64xbf16>
    %c0_34 = arith.constant 0 : index
    %c0_35 = arith.constant 0 : index
    %64 = vector.load %arg9[%c0_34, %c0_35] : memref<2x64xbf16, #tpu.memory_space<vmem>>, vector<1x64xbf16>
    %65 = vector.broadcast %64 : vector<1x64xbf16> to vector<8x64xbf16>
    %66 = arith.mulf %63, %65 : vector<8x64xbf16>
    %c0_36 = arith.constant 0 : index
    %c120 = arith.constant 120 : index
    %67 = vector.load %arg11[%c0_36, %c120] : memref<8x201xbf16, #tpu.memory_space<vmem>>, vector<8x64xbf16>
    %c0_37 = arith.constant 0 : index
    %c121 = arith.constant 121 : index
    %68 = vector.load %arg11[%c0_37, %c121] : memref<8x201xbf16, #tpu.memory_space<vmem>>, vector<8x64xbf16>
    %c1 = arith.constant 1 : index
    %c0_38 = arith.constant 0 : index
    %69 = vector.load %arg9[%c1, %c0_38] : memref<2x64xbf16, #tpu.memory_space<vmem>>, vector<1x64xbf16>
    %70 = vector.broadcast %69 : vector<1x64xbf16> to vector<8x64xbf16>
    %71 = arith.mulf %68, %70 : vector<8x64xbf16>
    %c0_39 = arith.constant 0 : index
    %c127 = arith.constant 127 : index
    %72 = vector.load %arg11[%c0_39, %c127] : memref<8x201xbf16, #tpu.memory_space<vmem>>, vector<8x64xbf16>
    %c0_40 = arith.constant 0 : index
    %c0_41 = arith.constant 0 : index
    %73 = vector.load %arg9[%c0_40, %c0_41] : memref<2x64xbf16, #tpu.memory_space<vmem>>, vector<1x64xbf16>
    %74 = vector.broadcast %73 : vector<1x64xbf16> to vector<8x64xbf16>
    %75 = arith.mulf %72, %74 : vector<8x64xbf16>
    %c0_42 = arith.constant 0 : index
    %c128_43 = arith.constant 128 : index
    %76 = vector.load %arg11[%c0_42, %c128_43] : memref<8x201xbf16, #tpu.memory_space<vmem>>, vector<8x64xbf16>
    %c0_44 = arith.constant 0 : index
    %c129 = arith.constant 129 : index
    %77 = vector.load %arg11[%c0_44, %c129] : memref<8x201xbf16, #tpu.memory_space<vmem>>, vector<8x64xbf16>
    %c1_45 = arith.constant 1 : index
    %c0_46 = arith.constant 0 : index
    %78 = vector.load %arg9[%c1_45, %c0_46] : memref<2x64xbf16, #tpu.memory_space<vmem>>, vector<1x64xbf16>
    %79 = vector.broadcast %78 : vector<1x64xbf16> to vector<8x64xbf16>
    %80 = arith.mulf %77, %79 : vector<8x64xbf16>
    %c0_47 = arith.constant 0 : index
    %c135 = arith.constant 135 : index
    %81 = vector.load %arg11[%c0_47, %c135] : memref<8x201xbf16, #tpu.memory_space<vmem>>, vector<8x64xbf16>
    %c0_48 = arith.constant 0 : index
    %c0_49 = arith.constant 0 : index
    %82 = vector.load %arg9[%c0_48, %c0_49] : memref<2x64xbf16, #tpu.memory_space<vmem>>, vector<1x64xbf16>
    %83 = vector.broadcast %82 : vector<1x64xbf16> to vector<8x64xbf16>
    %84 = arith.mulf %81, %83 : vector<8x64xbf16>
    %c0_50 = arith.constant 0 : index
    %c136 = arith.constant 136 : index
    %85 = vector.load %arg11[%c0_50, %c136] : memref<8x201xbf16, #tpu.memory_space<vmem>>, vector<8x64xbf16>
    %c0_51 = arith.constant 0 : index
    %c137 = arith.constant 137 : index
    %86 = vector.load %arg11[%c0_51, %c137] : memref<8x201xbf16, #tpu.memory_space<vmem>>, vector<8x64xbf16>
    %c1_52 = arith.constant 1 : index
    %c0_53 = arith.constant 0 : index
    %87 = vector.load %arg9[%c1_52, %c0_53] : memref<2x64xbf16, #tpu.memory_space<vmem>>, vector<1x64xbf16>
    %88 = vector.broadcast %87 : vector<1x64xbf16> to vector<8x64xbf16>
    %89 = arith.mulf %86, %88 : vector<8x64xbf16>
    %90 = tpu.concatenate %66, %67, %71, %75, %76, %80, %84, %85, %89 in 0 : vector<8x64xbf16>, vector<8x64xbf16>, vector<8x64xbf16>, vector<8x64xbf16>, vector<8x64xbf16>, vector<8x64xbf16>, vector<8x64xbf16>, vector<8x64xbf16>, vector<8x64xbf16> -> vector<72x64xbf16>
    %c0_54 = arith.constant 0 : index
    %c0_55 = arith.constant 0 : index
    %91 = vector.load %arg5[%c0_54, %c0_55] : memref<8x72xbf16, #tpu.memory_space<vmem>>, vector<8x72xbf16>
    %cst_56 = arith.constant dense<0.000000e+00> : vector<8x64xf32>
    %92 = tpu.matmul %91, %90, %cst_56 {dimension_numbers = #tpu.dot_dimension_numbers<[1], [0], [0], [1], [0, 0, 1, 1], [], []>} : vector<8x72xbf16>, vector<72x64xbf16>, vector<8x64xf32> -> vector<8x64xf32>
    %c0_57 = arith.constant 0 : index
    %c0_58 = arith.constant 0 : index
    %93 = vector.load %arg7[%c0_57, %c0_58] : memref<8x1xf32, #tpu.memory_space<vmem>>, vector<8x1xf32>
    %94 = vector.broadcast %93 : vector<8x1xf32> to vector<8x64xf32>
    %95 = arith.addf %92, %94 : vector<8x64xf32>
    %cst_59 = arith.constant 0.000000e+00 : f32
    %96 = vector.broadcast %cst_59 : f32 to vector<8x64xf32>
    %97 = arith.cmpf ogt, %95, %96 : vector<8x64xf32>
    %cst_60 = arith.constant 2.000000e-01 : f32
    %98 = vector.broadcast %cst_60 : f32 to vector<8x64xf32>
    %99 = arith.mulf %98, %95 : vector<8x64xf32>
    %100 = arith.select %97, %95, %99 : vector<8x64xi1>, vector<8x64xf32>
    %101 = arith.addf %100, %21 : vector<8x64xf32>
    %cst_61 = arith.constant 5.000000e-01 : f32
    %102 = vector.broadcast %cst_61 : f32 to vector<8x64xf32>
    %103 = arith.mulf %101, %102 : vector<8x64xf32>
    %104 = arith.truncf %103 : vector<8x64xf32> to vector<8x64xbf16>
    %c0_62 = arith.constant 0 : index
    %c0_63 = arith.constant 0 : index
    %c0_64 = arith.constant 0 : index
    %105 = vector.load %arg10[%c0_62, %c0_63, %c0_64] : memref<1x8x64xbf16, #tpu.memory_space<vmem>>, vector<1x8x64xbf16>
    %106 = vector.shape_cast %105 : vector<1x8x64xbf16> to vector<8x64xbf16>
    %107 = vector.shape_cast %104 : vector<8x64xbf16> to vector<1x8x64xbf16>
    tpu.vector_store %arg10[%c0_62, %c0_63, %c0_64], %107 {strides = array<i32>} : memref<1x8x64xbf16, #tpu.memory_space<vmem>>, vector<1x8x64xbf16>,
    return
  }
  func.func @transform_0(%arg0: i32, %arg1: i32) -> (i32, i32, i32) {
    %c0_i32 = arith.constant 0 : i32
    %c0_i32_0 = arith.constant 0 : i32
    return %arg0, %c0_i32, %arg1 : i32, i32, i32
  }
  func.func @transform_1(%arg0: i32, %arg1: i32) -> (i32, i32, i32, i32) {
    %c0_i32 = arith.constant 0 : i32
    %c0_i32_0 = arith.constant 0 : i32
    %c0_i32_1 = arith.constant 0 : i32
    return %arg0, %arg1, %c0_i32, %c0_i32_0 : i32, i32, i32, i32
  }
  func.func @transform_2(%arg0: i32, %arg1: i32) -> (i32, i32) {
    %c0_i32 = arith.constant 0 : i32
    %c0_i32_0 = arith.constant 0 : i32
    %c0_i32_1 = arith.constant 0 : i32
    return %c0_i32, %c0_i32_0 : i32, i32
  }
  func.func @transform_3(%arg0: i32, %arg1: i32) -> (i32, i32) {
    %c0_i32 = arith.constant 0 : i32
    %c0_i32_0 = arith.constant 0 : i32
    %c0_i32_1 = arith.constant 0 : i32
    return %c0_i32, %c0_i32_0 : i32, i32
  }
  func.func @transform_4(%arg0: i32, %arg1: i32) -> (i32, i32) {
    %c0_i32 = arith.constant 0 : i32
    %c0_i32_0 = arith.constant 0 : i32
    %c0_i32_1 = arith.constant 0 : i32
    return %c0_i32, %c0_i32_0 : i32, i32
  }
  func.func @transform_5(%arg0: i32, %arg1: i32) -> (i32, i32) {
    %c0_i32 = arith.constant 0 : i32
    %c0_i32_0 = arith.constant 0 : i32
    %c0_i32_1 = arith.constant 0 : i32
    return %c0_i32, %c0_i32_0 : i32, i32
  }
  func.func @transform_6(%arg0: i32, %arg1: i32) -> (i32, i32) {
    %c0_i32 = arith.constant 0 : i32
    %c0_i32_0 = arith.constant 0 : i32
    %c0_i32_1 = arith.constant 0 : i32
    return %c0_i32, %c0_i32_0 : i32, i32
  }
  func.func @transform_7(%arg0: i32, %arg1: i32) -> (i32, i32) {
    %c0_i32 = arith.constant 0 : i32
    %c0_i32_0 = arith.constant 0 : i32
    %c0_i32_1 = arith.constant 0 : i32
    return %c0_i32, %c0_i32_0 : i32, i32
  }
  func.func @transform_8(%arg0: i32, %arg1: i32) -> (i32, i32, i32) {
    %c0_i32 = arith.constant 0 : i32
    %c0_i32_0 = arith.constant 0 : i32
    return %arg0, %c0_i32, %arg1 : i32, i32, i32
  }
}

</mosaic_0001>

<llo_original>
// kernel: tpu_custom_call.1
$region0: #{tpu_custom_call.1}
  #allocation0 [shape = 'u32[]', space=smem, size = 0x4, offset = 0x4, fixed_abs, tag = 'smem constant byte address 0x4 - core index']
  #allocation1 [shape = 'u32[144,128]{1,0:T(1,128)}', space=vmem, size = 0x12000, scoped, tag = 'internal scratch']
  #allocation2 [shape = 'bf16[8,201]{1,0:T(8,128)(2,1)}', space=vmem, size = 0x1000, scoped, tag = 'scratch operand']
  %s0 = inlined_call_operand.vmem [shape: bf16[2,36,64], index: 0, kind: input, shape index: {}]
  %s1 = inlined_call_operand.vmem [shape: bf16[2,1,36,16], index: 1, kind: input, shape index: {}]
  %s2 = inlined_call_operand.vmem [shape: bf16[16,36], index: 2, kind: input, shape index: {}]
  %s3 = inlined_call_operand.vmem [shape: bf16[8,72], index: 3, kind: input, shape index: {}]
  %s4 = inlined_call_operand.vmem [shape: f32[8,1], index: 4, kind: input, shape index: {}]
  %s5 = inlined_call_operand.vmem [shape: f32[8,1], index: 5, kind: input, shape index: {}]
  %s6 = inlined_call_operand.vmem [shape: f32[8,1], index: 6, kind: input, shape index: {}]
  %s7 = inlined_call_operand.vmem [shape: bf16[2,64], index: 7, kind: input, shape index: {}]
  %s8 = inlined_call_operand.hbm [shape: bf16[2,8,64], index: 8, kind: output, shape index: {}]
  %s9 = sld [smem:[#allocation0]]
  $region65: #{tpu_custom_call.1} parent=0
    _
  %s11 = ssub.s32 1, %s9
  %s12 = scalar_select 0, %s11, %s9
  $region1: #{tpu_custom_call.1} parent=0
    #allocation3 [shape = 'u8[4096]{0}', space=vmem, size = 0x1000, scoped, tag = 'output window, operand 0']
    #allocation4 [shape = 's32[2]{0}', space=sflag, size = 0x8, scoped, tag = 'scoped memory for tpu_custom_call.1']
    %13 = vsyncpa [#allocation4], 0
    %s14 = scalar_lea.sflag [#allocation4], 1
    %15 = vsyncpa %s14, 0
    loop: start=0, step=1, limit=4
    $region2: #{tpu_custom_call.1} parent=1 // loop_pre_header
      _
    $region3: #{tpu_custom_call.1} parent=1 // loop_header
      %s17 = sphi 0, %s21
      %p18 = scmp.ge.s32.totalorder %s17, 4
      %s24 = sphi 0, %s36
      %s25 = sphi 0, %s32
      %s26 = sphi 0, %s24
      %s27 = sphi 0, %s25
      %s28 = sphi 0, %s26
      %s29 = sphi 0, %s27
      %s41 = sphi 0, %s43
      %s44 = sphi 0, %s41
      %s45 = sphi 0, %s44
      %s61 = sphi 0, %s45
      %s69 = sphi 0, %s71
      %s72 = sphi 0, %s69
      %s73 = sphi 0, %s72
      %s89 = sphi 0, %s73
      %s93 = sphi 0, %s93
      %s95 = sphi 0, %s93
      %s96 = sphi 0, %s95
      %s110 = sphi 0, %s96
      %s114 = sphi 0, %s114
      %s116 = sphi 0, %s114
      %s117 = sphi 0, %s116
      %s131 = sphi 0, %s117
      %s135 = sphi 0, %s135
      %s137 = sphi 0, %s135
      %s138 = sphi 0, %s137
      %s152 = sphi 0, %s138
      %s156 = sphi 0, %s156
      %s158 = sphi 0, %s156
      %s159 = sphi 0, %s158
      %s173 = sphi 0, %s159
      %s177 = sphi 0, %s177
      %s179 = sphi 0, %s177
      %s180 = sphi 0, %s179
      %s194 = sphi 0, %s180
      %s198 = sphi 0, %s198
      %s200 = sphi 0, %s198
      %s201 = sphi 0, %s200
      %s215 = sphi 0, %s201
      %s223 = sphi 0, %s225
      %s226 = sphi 0, %s223
      %s227 = sphi 0, %s226
      %s243 = sphi 0, %s227
    $region4: #{tpu_custom_call.1} parent=1 // loop_header_branch
      %20 = sbr.rel (%p18) target = $region8
    $region5: #{tpu_custom_call.1} parent=1 // loop_body
      %s22 = ssub.s32 %s17, 1
      %s23 = ssub.s32 %s17, 2
      %s30 = sadd.s32 1, %s25
      %p31 = scmp.ge.s32.totalorder %s30, 1
      %s32 = scalar_select %p31, 0, %s30
      %s33 = sadd.s32 1, %s24
      %s34 = scalar_select %p31, %s33, %s24
      %p35 = scmp.ge.s32.totalorder %s34, 2
      %s36 = scalar_select %p35, 0, %s34
      %s37 = ssub.s32 %s24, %s36
      %s38 = ssub.s32 %s25, %s32
      %s39 = sor.u32 %s37, %s38
      %p40 = scmp.eq.s32.totalorder %s39, 0
      %s42 = sadd.s32 %s41, 1
      %s43 = scalar_select %p40, %s41, %s42
      %p46 = pneg %p40
      %p47 = scmp.eq.s32.totalorder %s17, 1
      %p48 = por %p46, %p47
      %p49 = scmp.ne.s32.totalorder %s41, %s44
      %p50 = scmp.eq.s32.totalorder %s17, 0
      %p51 = por %p49, %p50
      %p52 = scmp.ne.s32.totalorder %s41, %s44
      %p53 = scmp.eq.s32.totalorder %s22, 1
      %p54 = por %p52, %p53
      %p55 = scmp.ne.s32.totalorder %s44, %s45
      %p56 = scmp.eq.s32.totalorder %s22, 0
      %p57 = por %p55, %p56
      %p58 = scmp.ne.s32.totalorder %s44, %s45
      %p59 = scmp.eq.s32.totalorder %s23, 1
      %p60 = por %p58, %p59
      %p62 = scmp.ne.s32.totalorder %s45, %s61
      %p63 = scmp.eq.s32.totalorder %s23, 0
      %p64 = por %p62, %p63
      %s65 = ssub.s32 %s24, %s36
      %s66 = ssub.s32 %s25, %s32
      %s67 = sor.u32 %s65, %s66
      %p68 = scmp.eq.s32.totalorder %s67, 0
      %s70 = sadd.s32 %s69, 1
      %s71 = scalar_select %p68, %s69, %s70
      %p74 = pneg %p68
      %p75 = scmp.eq.s32.totalorder %s17, 1
      %p76 = por %p74, %p75
      %p77 = scmp.ne.s32.totalorder %s69, %s72
      %p78 = scmp.eq.s32.totalorder %s17, 0
      %p79 = por %p77, %p78
      %p80 = scmp.ne.s32.totalorder %s69, %s72
      %p81 = scmp.eq.s32.totalorder %s22, 1
      %p82 = por %p80, %p81
      %p83 = scmp.ne.s32.totalorder %s72, %s73
      %p84 = scmp.eq.s32.totalorder %s22, 0
      %p85 = por %p83, %p84
      %p86 = scmp.ne.s32.totalorder %s72, %s73
      %p87 = scmp.eq.s32.totalorder %s23, 1
      %p88 = por %p86, %p87
      %p90 = scmp.ne.s32.totalorder %s73, %s89
      %p91 = scmp.eq.s32.totalorder %s23, 0
      %p92 = por %p90, %p91
      %s94 = sadd.s32 %s93, 1
      %p97 = scmp.eq.s32.totalorder %s17, 1
      %p98 = scmp.ne.s32.totalorder %s93, %s95
      %p99 = scmp.eq.s32.totalorder %s17, 0
      %p100 = por %p98, %p99
      %p101 = scmp.ne.s32.totalorder %s93, %s95
      %p102 = scmp.eq.s32.totalorder %s22, 1
      %p103 = por %p101, %p102
      %p104 = scmp.ne.s32.totalorder %s95, %s96
      %p105 = scmp.eq.s32.totalorder %s22, 0
      %p106 = por %p104, %p105
      %p107 = scmp.ne.s32.totalorder %s95, %s96
      %p108 = scmp.eq.s32.totalorder %s23, 1
      %p109 = por %p107, %p108
      %p111 = scmp.ne.s32.totalorder %s96, %s110
      %p112 = scmp.eq.s32.totalorder %s23, 0
      %p113 = por %p111, %p112
      %s115 = sadd.s32 %s114, 1
      %p118 = scmp.eq.s32.totalorder %s17, 1
      %p119 = scmp.ne.s32.totalorder %s114, %s116
      %p120 = scmp.eq.s32.totalorder %s17, 0
      %p121 = por %p119, %p120
      %p122 = scmp.ne.s32.totalorder %s114, %s116
      %p123 = scmp.eq.s32.totalorder %s22, 1
      %p124 = por %p122, %p123
      %p125 = scmp.ne.s32.totalorder %s116, %s117
      %p126 = scmp.eq.s32.totalorder %s22, 0
      %p127 = por %p125, %p126
      %p128 = scmp.ne.s32.totalorder %s116, %s117
      %p129 = scmp.eq.s32.totalorder %s23, 1
      %p130 = por %p128, %p129
      %p132 = scmp.ne.s32.totalorder %s117, %s131
      %p133 = scmp.eq.s32.totalorder %s23, 0
      %p134 = por %p132, %p133
      %s136 = sadd.s32 %s135, 1
      %p139 = scmp.eq.s32.totalorder %s17, 1
      %p140 = scmp.ne.s32.totalorder %s135, %s137
      %p141 = scmp.eq.s32.totalorder %s17, 0
      %p142 = por %p140, %p141
      %p143 = scmp.ne.s32.totalorder %s135, %s137
      %p144 = scmp.eq.s32.totalorder %s22, 1
      %p145 = por %p143, %p144
      %p146 = scmp.ne.s32.totalorder %s137, %s138
      %p147 = scmp.eq.s32.totalorder %s22, 0
      %p148 = por %p146, %p147
      %p149 = scmp.ne.s32.totalorder %s137, %s138
      %p150 = scmp.eq.s32.totalorder %s23, 1
      %p151 = por %p149, %p150
      %p153 = scmp.ne.s32.totalorder %s138, %s152
      %p154 = scmp.eq.s32.totalorder %s23, 0
      %p155 = por %p153, %p154
      %s157 = sadd.s32 %s156, 1
      %p160 = scmp.eq.s32.totalorder %s17, 1
      %p161 = scmp.ne.s32.totalorder %s156, %s158
      %p162 = scmp.eq.s32.totalorder %s17, 0
      %p163 = por %p161, %p162
      %p164 = scmp.ne.s32.totalorder %s156, %s158
      %p165 = scmp.eq.s32.totalorder %s22, 1
      %p166 = por %p164, %p165
      %p167 = scmp.ne.s32.totalorder %s158, %s159
      %p168 = scmp.eq.s32.totalorder %s22, 0
      %p169 = por %p167, %p168
      %p170 = scmp.ne.s32.totalorder %s158, %s159
      %p171 = scmp.eq.s32.totalorder %s23, 1
      %p172 = por %p170, %p171
      %p174 = scmp.ne.s32.totalorder %s159, %s173
      %p175 = scmp.eq.s32.totalorder %s23, 0
      %p176 = por %p174, %p175
      %s178 = sadd.s32 %s177, 1
      %p181 = scmp.eq.s32.totalorder %s17, 1
      %p182 = scmp.ne.s32.totalorder %s177, %s179
      %p183 = scmp.eq.s32.totalorder %s17, 0
      %p184 = por %p182, %p183
      %p185 = scmp.ne.s32.totalorder %s177, %s179
      %p186 = scmp.eq.s32.totalorder %s22, 1
      %p187 = por %p185, %p186
      %p188 = scmp.ne.s32.totalorder %s179, %s180
      %p189 = scmp.eq.s32.totalorder %s22, 0
      %p190 = por %p188, %p189
      %p191 = scmp.ne.s32.totalorder %s179, %s180
      %p192 = scmp.eq.s32.totalorder %s23, 1
      %p193 = por %p191, %p192
      %p195 = scmp.ne.s32.totalorder %s180, %s194
      %p196 = scmp.eq.s32.totalorder %s23, 0
      %p197 = por %p195, %p196
      %s199 = sadd.s32 %s198, 1
      %p202 = scmp.eq.s32.totalorder %s17, 1
      %p203 = scmp.ne.s32.totalorder %s198, %s200
      %p204 = scmp.eq.s32.totalorder %s17, 0
      %p205 = por %p203, %p204
      %p206 = scmp.ne.s32.totalorder %s198, %s200
      %p207 = scmp.eq.s32.totalorder %s22, 1
      %p208 = por %p206, %p207
      %p209 = scmp.ne.s32.totalorder %s200, %s201
      %p210 = scmp.eq.s32.totalorder %s22, 0
      %p211 = por %p209, %p210
      %p212 = scmp.ne.s32.totalorder %s200, %s201
      %p213 = scmp.eq.s32.totalorder %s23, 1
      %p214 = por %p212, %p213
      %p216 = scmp.ne.s32.totalorder %s201, %s215
      %p217 = scmp.eq.s32.totalorder %s23, 0
      %p218 = por %p216, %p217
      %s219 = ssub.s32 %s24, %s36
      %s220 = ssub.s32 %s25, %s32
      %s221 = sor.u32 %s219, %s220
      %p222 = scmp.eq.s32.totalorder %s221, 0
      %s224 = sadd.s32 %s223, 1
      %s225 = scalar_select %p222, %s223, %s224
      %p228 = pneg %p222
      %p229 = scmp.eq.s32.totalorder %s17, 1
      %p230 = por %p228, %p229
      %p231 = scmp.ne.s32.totalorder %s223, %s226
      %p232 = scmp.eq.s32.totalorder %s17, 0
      %p233 = por %p231, %p232
      %p234 = scmp.ne.s32.totalorder %s223, %s226
      %p235 = scmp.eq.s32.totalorder %s22, 1
      %p236 = por %p234, %p235
      %p237 = scmp.ne.s32.totalorder %s226, %s227
      %p238 = scmp.eq.s32.totalorder %s22, 0
      %p239 = por %p237, %p238
      %p240 = scmp.ne.s32.totalorder %s226, %s227
      %p241 = scmp.eq.s32.totalorder %s23, 1
      %p242 = por %p240, %p241
      %p244 = scmp.ne.s32.totalorder %s227, %s243
      %p245 = scmp.eq.s32.totalorder %s23, 0
      %p246 = por %p244, %p245
      %p247 = scmp.le.s32.totalorder 1, %s17
      %p248 = scmp.lt.s32.totalorder %s17, 3
      %p249 = pnand %p247, %p248
      %p250 = pneg %p249
      // Predicated region
      $region9: #{tpu_custom_call.1} parent=5 // pred_check
        _
      $region10: #{tpu_custom_call.1} parent=5 // pred_check_branch
        %252 = sbr.rel (%p249) target = $region12
      $region11: #{tpu_custom_call.1} parent=5 // pred_region
        %s253 = ssub.s32 %s17, 1
        // Predicated region
        $region13: #{tpu_custom_call.1} parent=11 // pred_check
          %p254 = pneg %p106
        $region14: #{tpu_custom_call.1} parent=11 // pred_check_branch
          %256 = sbr.rel (%p254) target = $region16
        $region15: #{tpu_custom_call.1} parent=11 // pred_region
          _
        $region16: #{tpu_custom_call.1} parent=11 // pred_fallthru
          _
        // Predicated region
        $region17: #{tpu_custom_call.1} parent=11 // pred_check
          %p257 = pneg %p127
        $region18: #{tpu_custom_call.1} parent=11 // pred_check_branch
          %259 = sbr.rel (%p257) target = $region20
        $region19: #{tpu_custom_call.1} parent=11 // pred_region
          _
        $region20: #{tpu_custom_call.1} parent=11 // pred_fallthru
          _
        // Predicated region
        $region21: #{tpu_custom_call.1} parent=11 // pred_check
          %p260 = pneg %p148
        $region22: #{tpu_custom_call.1} parent=11 // pred_check_branch
          %262 = sbr.rel (%p260) target = $region24
        $region23: #{tpu_custom_call.1} parent=11 // pred_region
          _
        $region24: #{tpu_custom_call.1} parent=11 // pred_fallthru
          _
        // Predicated region
        $region25: #{tpu_custom_call.1} parent=11 // pred_check
          %p263 = pneg %p169
        $region26: #{tpu_custom_call.1} parent=11 // pred_check_branch
          %265 = sbr.rel (%p263) target = $region28
        $region27: #{tpu_custom_call.1} parent=11 // pred_region
          _
        $region28: #{tpu_custom_call.1} parent=11 // pred_fallthru
          _
        // Predicated region
        $region29: #{tpu_custom_call.1} parent=11 // pred_check
          %p266 = pneg %p190
        $region30: #{tpu_custom_call.1} parent=11 // pred_check_branch
          %268 = sbr.rel (%p266) target = $region32
        $region31: #{tpu_custom_call.1} parent=11 // pred_region
          _
        $region32: #{tpu_custom_call.1} parent=11 // pred_fallthru
          _
        // Predicated region
        $region33: #{tpu_custom_call.1} parent=11 // pred_check
          %p269 = pneg %p211
        $region34: #{tpu_custom_call.1} parent=11 // pred_check_branch
          %271 = sbr.rel (%p269) target = $region36
        $region35: #{tpu_custom_call.1} parent=11 // pred_region
          _
        $region36: #{tpu_custom_call.1} parent=11 // pred_fallthru
          _
      $region12: #{tpu_custom_call.1} parent=5 // pred_fallthru
        _
      %p272 = scmp.lt.s32.totalorder %s17, 2
      // Predicated region
      $region37: #{tpu_custom_call.1} parent=5 // pred_check
        %p273 = pneg %p272
      $region38: #{tpu_custom_call.1} parent=5 // pred_check_branch
        %275 = sbr.rel (%p273) target = $region40
      $region39: #{tpu_custom_call.1} parent=5 // pred_region
        // Predicated region
        $region41: #{tpu_custom_call.1} parent=39 // pred_check
          %p276 = pneg %p51
        $region42: #{tpu_custom_call.1} parent=39 // pred_check_branch
          %278 = sbr.rel (%p276) target = $region44
        $region43: #{tpu_custom_call.1} parent=39 // pred_region
          %p279 = scmp.lt.s32.totalorder %s24, 1
          %s280 = scalar_select %p279, %s24, 1
          %p281 = scmp.lt.s32.totalorder %s25, 0
          %s282 = scalar_select %p281, %s25, 0
          %s283 = smul.addr %s280, 5
          %s284 = sadd.s32 %s282, %s283
          %s285 = smul.addr %s284, 4
          %s286 = scalar_lea.vmem %s0, %s285
        $region44: #{tpu_custom_call.1} parent=39 // pred_fallthru
          _
        // Predicated region
        $region45: #{tpu_custom_call.1} parent=39 // pred_check
          %p287 = pneg %p79
        $region46: #{tpu_custom_call.1} parent=39 // pred_check_branch
          %289 = sbr.rel (%p287) target = $region48
        $region47: #{tpu_custom_call.1} parent=39 // pred_region
          %p290 = scmp.lt.s32.totalorder %s24, 1
          %s291 = scalar_select %p290, %s24, 1
          %p292 = scmp.lt.s32.totalorder %s25, 0
          %s293 = scalar_select %p292, %s25, 0
          %s294 = smul.addr %s293, 5
          %s295 = smul.addr %s291, 5
          %s296 = sadd.s32 %s294, %s295
          %s297 = smul.addr %s296, 4
          %s298 = scalar_lea.vmem %s1, %s297
        $region48: #{tpu_custom_call.1} parent=39 // pred_fallthru
          _
      $region40: #{tpu_custom_call.1} parent=5 // pred_fallthru
        _
      %p299 = scmp.le.s32.totalorder 1, %s17
      %p300 = scmp.lt.s32.totalorder %s17, 3
      %p301 = pnand %p299, %p300
      %p302 = pneg %p301
      // Predicated region
      $region49: #{tpu_custom_call.1} parent=5 // pred_check
        _
      $region50: #{tpu_custom_call.1} parent=5 // pred_check_branch
        %304 = sbr.rel (%p301) target = $region52
      $region51: #{tpu_custom_call.1} parent=5 // pred_region
        %s305 = ssub.s32 %s17, 1
        %p306 = scmp.lt.s32.totalorder %s26, 1
        %s307 = scalar_select %p306, %s26, 1
        %p308 = scmp.lt.s32.totalorder %s27, 0
        %s309 = scalar_select %p308, %s27, 0
        %s310 = smul.addr %s307, 5
        %s311 = sadd.s32 %s309, %s310
        %s312 = smul.addr %s311, 4
        %s313 = scalar_lea.vmem %s0, %s312
        %p314 = pneg %p57
        %p315 = pneg %p54
        %p316 = scmp.lt.s32.totalorder %s26, 1
        %s317 = scalar_select %p316, %s26, 1
        %p318 = scmp.lt.s32.totalorder %s27, 0
        %s319 = scalar_select %p318, %s27, 0
        %s320 = smul.addr %s319, 5
        %s321 = smul.addr %s317, 5
        %s322 = sadd.s32 %s320, %s321
        %s323 = smul.addr %s322, 4
        %s324 = scalar_lea.vmem %s1, %s323
        %p325 = pneg %p85
        %p326 = pneg %p82
        %p327 = pneg %p106
        %p328 = pneg %p103
        %p329 = pneg %p127
        %p330 = pneg %p124
        %p331 = pneg %p148
        %p332 = pneg %p145
        %p333 = pneg %p169
        %p334 = pneg %p166
        %p335 = pneg %p190
        %p336 = pneg %p187
        %p337 = pneg %p211
        %p338 = pneg %p208
        %p339 = pneg %p239
        %p340 = pneg %p236
        %s341 = sand.u32 %s226, 1
        %s342 = scalar_lea.sflag [#allocation4], %s341
        %s343 = sand.u32 %s226, 1
        %s344 = smul.addr %s343, 4
        %s345 = scalar_lea.vmem [#allocation3], %s344
        %p346 = scmp.lt.s32.totalorder %s26, 1
        %s347 = scalar_select %p346, %s26, 1
        %p348 = scmp.lt.s32.totalorder %s27, 0
        %s349 = scalar_select %p348, %s27, 0
        %s350 = smul.addr %s347, 5
        %s351 = sadd.s32 %s349, %s350
        %s352 = smul.addr %s351, 4
        %s353 = scalar_lea.vmem %s0, %s352
        %p354 = scmp.lt.s32.totalorder %s26, 1
        %s355 = scalar_select %p354, %s26, 1
        %p356 = scmp.lt.s32.totalorder %s27, 0
        %s357 = scalar_select %p356, %s27, 0
        %s358 = smul.addr %s357, 5
        %s359 = smul.addr %s355, 5
        %s360 = sadd.s32 %s358, %s359
        %s361 = smul.addr %s360, 4
        %s362 = scalar_lea.vmem %s1, %s361
        %v364 = vld [vmem:[%s2] sm:$0xf]
        %v365 = vld [vmem:[%s2 + $0x4] sm:$0xf]
        %v366 = vld [vmem:[%s353] sm:$0xf]
        %v367 = vld [vmem:[%s353 + $0x4] sm:$0xf]
        %v368 = vld [vmem:[%s353 + $0x8] sm:$0xf]
        %v369 = vld [vmem:[%s353 + $0xc] sm:$0xf]
        %v370 = vld [vmem:[%s353 + $0x10] sm:$0x3]
        %v373 = vunpack.c.l.b16 %v364
        %v374 = vunpack.c.l.b16 %v365
        %v375 = vpack.c.b16 %v374, %v373
        %v381 = vunpack.c.l.b16 %v366
        %v382 = vunpack.c.l.b16 %v367
        %v383 = vunpack.c.l.b16 %v368
        %v384 = vunpack.c.l.b16 %v369
        %v385 = vunpack.c.l.b16 %v370
        %v386 = vpack.c.b16 %v382, %v381
        %v387 = vpack.c.b16 %v384, %v383
        %v388 = vpack.c.b16 %v385, %v385
        %vm391 = vcmask 293888
        %v393 = vsel %vm391, %v375, 0
        %vm395 = vcmask 1041408
        %v397 = vsel %vm395, %v388, 0
        %399 = vmatprep.subr.bf16.mxu0 0
        %400 = vmatpush1.bf16.msra.mxu0 %v386
        %401 = vmatprep.subr.bf16.mxu0 0
        %402 = vmatpush1.bf16.msra.mxu0 %v387
        %403 = vmatprep.subr.bf16.mxu0 0
        %404 = vmatpush1.bf16.msra.mxu0 %v397
        %405 = vmatprep.subr.bf16.mxu0 0
        %406 = vmatpush1.bf16.msra.mxu0 0
        %407 = vmatprep.subr.bf16.mxu0 0
        %408 = vmatpush1.bf16.msra.mxu0 0
        %409 = vmatprep.subr.bf16.mxu0 0
        %410 = vmatpush1.bf16.msra.mxu0 0
        %411 = vmatprep.subr.bf16.mxu0 0
        %412 = vmatpush1.bf16.msra.mxu0 0
        %413 = vmatprep.subr.bf16.mxu0 0
        %414 = vmatpush1.bf16.msra.mxu0 0
        %415 = vmatprep.subr.bf16.mxu0 0
        %416 = vmatpush1.bf16.msra.mxu0 0
        %417 = vmatprep.subr.bf16.mxu0 0
        %418 = vmatpush1.bf16.msra.mxu0 0
        %419 = vmatprep.subr.bf16.mxu0 0
        %420 = vmatpush1.bf16.msra.mxu0 0
        %421 = vmatprep.subr.bf16.mxu0 0
        %422 = vmatpush1.bf16.msra.mxu0 0
        %423 = vmatprep.subr.bf16.mxu0 0
        %424 = vmatpush1.bf16.msra.mxu0 0
        %425 = vmatprep.subr.bf16.mxu0 0
        %426 = vmatpush1.bf16.msra.mxu0 0
        %427 = vmatprep.subr.bf16.mxu0 0
        %428 = vmatpush1.bf16.msra.mxu0 0
        %429 = vmatprep.subr.bf16.mxu0 0
        %430 = vmatpush1.bf16.msra.mxu0 0
        %431 = vmatprep.mubr.bf16.mxu0 0
        %432 = vmatmul.mubr.bf16.gmra.mrb[0].mxu0 %v393
        %v433 = vpop.f32.mrb[0].mxu0
        %v434 = vadd.f32 0.0, %v433
        %v435 = vpop.f32.mrb[0].mxu0
        %v436 = vpop.f32.mrb[0].mxu0
        %v437 = vadd.f32 0.0, %v436
        %v438 = vpop.f32.mrb[0].mxu0
        %439 = vdwg.mxu0
        %v440 = vld [vmem:[%s4] sm:$0xff]
        %442 = vset.pattern.permute.xlu0 0
        %443 = vperm.xlu0 %442, %v440
        %v444 = vpop.permute.xlu0 %443
        %v446 = vadd.f32 %v434, %v444
        %vm447 = vcmp.gt.f32.partialorder %v446, 0.0
        %v448 = vmul.f32 %v446, 0.2
        %v449 = vsel %vm447, %v446, %v448
        %v450 = vld [vmem:[%s6] sm:$0xff]
        %452 = vset.pattern.permute.xlu0 0
        %453 = vperm.xlu0 %452, %v450
        %v454 = vpop.permute.xlu0 %453
        %v456 = vadd.f32 %v437, %v454
        %vm457 = vcmp.gt.f32.partialorder %v456, 0.0
        %v458 = vmul.f32 %v456, 0.2
        %v459 = vsel %vm457, %v456, %v458
        %v460 = vld [vmem:[%s362] sm:$0xf]
        %v461 = vld [vmem:[%s362 + $0x4] sm:$0xf]
        %v462 = vld [vmem:[%s362 + $0x8] sm:$0xf]
        %v463 = vld [vmem:[%s362 + $0xc] sm:$0xf]
        %v464 = vld [vmem:[%s362 + $0x10] sm:$0x3]
        %v470 = vunpack.c.l.b16 %v460
        %v471 = vunpack.c.l.b16 %v461
        %v472 = vunpack.c.l.b16 %v462
        %v473 = vunpack.c.l.b16 %v463
        %v474 = vunpack.c.l.b16 %v464
        %v475 = vpack.c.b16 %v471, %v470
        %v476 = vpack.c.b16 %v473, %v472
        %v477 = vpack.c.b16 %v474, %v474
        %v481 = vsel %vm395, %v477, 0
        %483 = vmatprep.subr.bf16.mxu0 0
        %484 = vmatpush1.bf16.msra.mxu0 %v475
        %485 = vmatprep.subr.bf16.mxu0 0
        %486 = vmatpush1.bf16.msra.mxu0 %v476
        %487 = vmatprep.subr.bf16.mxu0 0
        %488 = vmatpush1.bf16.msra.mxu0 %v481
        %489 = vmatprep.subr.bf16.mxu0 0
        %490 = vmatpush1.bf16.msra.mxu0 0
        %491 = vmatprep.subr.bf16.mxu0 0
        %492 = vmatpush1.bf16.msra.mxu0 0
        %493 = vmatprep.subr.bf16.mxu0 0
        %494 = vmatpush1.bf16.msra.mxu0 0
        %495 = vmatprep.subr.bf16.mxu0 0
        %496 = vmatpush1.bf16.msra.mxu0 0
        %497 = vmatprep.subr.bf16.mxu0 0
        %498 = vmatpush1.bf16.msra.mxu0 0
        %499 = vmatprep.subr.bf16.mxu0 0
        %500 = vmatpush1.bf16.msra.mxu0 0
        %501 = vmatprep.subr.bf16.mxu0 0
        %502 = vmatpush1.bf16.msra.mxu0 0
        %503 = vmatprep.subr.bf16.mxu0 0
        %504 = vmatpush1.bf16.msra.mxu0 0
        %505 = vmatprep.subr.bf16.mxu0 0
        %506 = vmatpush1.bf16.msra.mxu0 0
        %507 = vmatprep.subr.bf16.mxu0 0
        %508 = vmatpush1.bf16.msra.mxu0 0
        %509 = vmatprep.subr.bf16.mxu0 0
        %510 = vmatpush1.bf16.msra.mxu0 0
        %511 = vmatprep.subr.bf16.mxu0 0
        %512 = vmatpush1.bf16.msra.mxu0 0
        %513 = vmatprep.subr.bf16.mxu0 0
        %514 = vmatpush1.bf16.msra.mxu0 0
        %515 = vmatprep.mubr.bf16.mxu0 0
        %516 = vmatmul.mubr.bf16.gmra.mrb[0].mxu0 %v393
        %v517 = vpop.f32.mrb[0].mxu0
        %v518 = vadd.f32 0.0, %v517
        %v519 = vpop.f32.mrb[0].mxu0
        %v520 = vpop.f32.mrb[0].mxu0
        %v521 = vpop.f32.mrb[0].mxu0
        %522 = vdwg.mxu0
        %p523 = scmp.gt.s32.totalorder %s27, 0
        %s524 = scalar_select %p523, 1, 0
        %s525 = scvt.s32.f32 %s524
        %p526 = scmp.lt.s32.totalorder %s27, 0
        %s527 = scalar_select %p526, 1, 0
        %s528 = scvt.s32.f32 %s527
        %v529 = vadd.f32 %v518, %v444
        %vm530 = vcmp.gt.f32.partialorder %v529, 0.0
        %v531 = vmul.f32 %v529, 0.2
        %v532 = vsel %vm530, %v529, %v531
        %v533 = vstv %s525
        %v534 = vmul.f32 %v532, %v533
        %v535 = vstv %s528
        %v536 = vmul.f32 %v532, %v535
        %v537 = vpack.c.bf16 %v534, %v534
        %539 = vrot.lane.b32.xlu0 %v537, 1
        %v540 = vpop.permute.xlu0 %539
        %vm541 = vcmask 7168
        %v544 = vsel %vm541, 0, %v540
        %v546 = vunpack.c.l.b16 %v544
        %v547 = vpack.c.b16 %v546, %v546
        %548 = vrot.lane.b32.xlu0 %v547, 119
        %v549 = vpop.permute.xlu0 %548
        %vm551 = vcmask 1044408
        %552 = vst.msk [vmem:[#allocation2] sm:$0xf] %vm551, %v549
        %v553 = vpack.c.bf16 %v449, %v449
        %vm554 = vcmask 519168
        %555 = vst.msk [vmem:[#allocation2 + $0x4] sm:$0xf] %vm554, %v553
        %v556 = vpack.c.bf16 %v536, %v536
        %558 = vrot.lane.b32.xlu0 %v556, 120
        %v559 = vpop.permute.xlu0 %558
        %vm560 = vcmask 64512
        %v562 = vsel %vm560, %v559, 0
        %v564 = vunpack.c.l.b16 %v562
        %v565 = vpack.c.b16 %v564, %v564
        %566 = vrot.lane.b32.xlu0 %v565, 64
        %v567 = vpop.permute.xlu0 %566
        %vm569 = vcmask 593408
        %570 = vst.msk [vmem:[#allocation2 + $0x4] sm:$0xf] %vm569, %v567
        %v571 = vld [vmem:[#allocation2] sm:$0xff]
        %v572 = vld [vmem:[%s7] sm:$0x1]
        %v574 = vpack.i.b16 %v572, %v572
        %v576 = vlaneseq
        %v577 = vshrl.u32 %v576, 7
        %v578 = vsub.s32 0, %v577
        %v579 = vrot.slane %v574, %v578
        %v581 = vunpack.c.l.b16 %v579
        %v582 = vpack.c.b16 %v581, %v581
        %583 = vrot.lane.b32.xlu0 %v582, 119
        %v584 = vpop.permute.xlu0 %583
        %v585 = vrot.slane %v584, 4
        %vm586 = vcmask 973824
        %v587 = vsel %vm586, %v585, %v584
        %v589 = vmul.bf16 %v571, %v587
        %v590 = vshrl.u32 %v572, 16
        %v591 = vpack.i.b16 %v590, %v590
        %v593 = vlaneseq
        %v594 = vshrl.u32 %v593, 7
        %v595 = vsub.s32 0, %v594
        %v596 = vrot.slane %v591, %v595
        %v598 = vunpack.c.l.b16 %v596
        %v599 = vpack.c.b16 %v598, %v598
        %600 = vrot.lane.b32.xlu0 %v599, 121
        %v601 = vpop.permute.xlu0 %600
        %v602 = vrot.slane %v601, 4
        %vm603 = vcmask 990208
        %v604 = vsel %vm603, %v602, %v601
        %v606 = vmul.bf16 %v571, %v604
        %607 = vrot.lane.b32.xlu0 %v582, 127
        %v608 = vpop.permute.xlu0 %607
        %v609 = vrot.slane %v608, 4
        %vm610 = vcmask 1039360
        %v611 = vsel %vm610, %v609, %v608
        %v613 = vmul.bf16 %v571, %v611
        %v614 = vld [vmem:[#allocation2 + $0x4] sm:$0xf]
        %615 = vrot.lane.b32.xlu0 %v599, 1
        %v616 = vpop.permute.xlu0 %615
        %v618 = vmul.bf16 %v614, %v616
        %619 = vrot.lane.b32.xlu0 %v582, 7
        %v620 = vpop.permute.xlu0 %619
        %v622 = vmul.bf16 %v614, %v620
        %623 = vrot.lane.b32.xlu0 %v599, 9
        %v624 = vpop.permute.xlu0 %623
        %v626 = vmul.bf16 %v614, %v624
        %v628 = vunpack.c.l.b16 %v589
        %v629 = vunpack.c.h.b16 %v589
        %v630 = vpack.c.b16 %v628, %v628
        %v631 = vpack.c.b16 %v629, %v629
        %v633 = vunpack.c.l.b16 %v571
        %v634 = vunpack.c.h.b16 %v571
        %v635 = vpack.c.b16 %v633, %v633
        %v636 = vpack.c.b16 %v634, %v634
        %637 = vrot.lane.b32.xlu0 %v635, 127
        %v638 = vpop.permute.xlu0 %637
        %639 = vrot.lane.b32.xlu0 %v636, 127
        %v640 = vpop.permute.xlu0 %639
        %v641 = vsel %vm610, %v638, %v640
        %v643 = vunpack.c.l.b16 %v606
        %v644 = vunpack.c.h.b16 %v606
        %v645 = vpack.c.b16 %v643, %v643
        %v646 = vpack.c.b16 %v644, %v644
        %647 = vrot.lane.b32.xlu0 %v645, 126
        %v648 = vpop.permute.xlu0 %647
        %649 = vrot.lane.b32.xlu0 %v646, 126
        %v650 = vpop.permute.xlu0 %649
        %vm651 = vcmask 1031168
        %v652 = vsel %vm651, %v648, %v650
        %v654 = vunpack.c.l.b16 %v613
        %v655 = vunpack.c.h.b16 %v613
        %v656 = vpack.c.b16 %v654, %v654
        %v657 = vpack.c.b16 %v655, %v655
        %658 = vrot.lane.b32.xlu0 %v656, 120
        %v659 = vpop.permute.xlu0 %658
        %660 = vrot.lane.b32.xlu0 %v657, 120
        %v661 = vpop.permute.xlu0 %660
        %vm662 = vcmask 982016
        %v663 = vsel %vm662, %v659, %v661
        %v665 = vunpack.c.l.b16 %v614
        %v666 = vpack.c.b16 %v665, %v665
        %667 = vrot.lane.b32.xlu0 %v666, 119
        %v668 = vpop.permute.xlu0 %667
        %v670 = vunpack.c.l.b16 %v618
        %v671 = vpack.c.b16 %v670, %v670
        %672 = vrot.lane.b32.xlu0 %v671, 118
        %v673 = vpop.permute.xlu0 %672
        %v675 = vunpack.c.l.b16 %v622
        %v676 = vpack.c.b16 %v675, %v675
        %677 = vrot.lane.b32.xlu0 %v676, 112
        %v678 = vpop.permute.xlu0 %677
        %679 = vrot.lane.b32.xlu0 %v666, 111
        %v680 = vpop.permute.xlu0 %679
        %v682 = vunpack.c.l.b16 %v626
        %v683 = vpack.c.b16 %v682, %v682
        %684 = vrot.lane.b32.xlu0 %v683, 110
        %v685 = vpop.permute.xlu0 %684
        %vm686 = vcmask 1043456
        %v689 = vsel %vm686, %v630, %v641
        %v692 = vsel %vm686, %v631, %v640
        %v695 = vsel %vm686, %v652, %v663
        %v698 = vsel %vm686, %v650, %v661
        %v701 = vsel %vm686, %v668, %v673
        %v704 = vsel %vm686, %v678, %v680
        %v705 = vld [vmem:[%s3] sm:$0xf]
        %v706 = vld [vmem:[%s5] sm:$0xff]
        %708 = vset.pattern.permute.xlu0 0
        %709 = vperm.xlu0 %708, %v706
        %v710 = vpop.permute.xlu0 %709
        %718 = vrot.lane.b32.xlu0 %v689, 9
        %v719 = vpop.permute.xlu0 %718
        %720 = vrot.lane.b32.xlu0 %v692, 9
        %v721 = vpop.permute.xlu0 %720
        %722 = vrot.lane.b32.xlu0 %v695, 9
        %v723 = vpop.permute.xlu0 %722
        %724 = vrot.lane.b32.xlu0 %v698, 9
        %v725 = vpop.permute.xlu0 %724
        %726 = vrot.lane.b32.xlu0 %v701, 9
        %v727 = vpop.permute.xlu0 %726
        %728 = vrot.lane.b32.xlu0 %v704, 9
        %v729 = vpop.permute.xlu0 %728
        %730 = vrot.lane.b32.xlu0 %v685, 9
        %v731 = vpop.permute.xlu0 %730
        %vm732 = vcmask 72704
        %v733 = vsel %vm732, %v719, %v721
        %v734 = vsel %vm732, %v723, %v725
        %vm739 = vcmask 588800
        %v741 = vsel %vm739, %v705, 0
        %v744 = vsel %vm686, %v731, 0
        %746 = vmatprep.subr.bf16.mxu0 0
        %747 = vmatpush1.bf16.msra.mxu0 %v733
        %748 = vmatprep.subr.bf16.mxu0 0
        %749 = vmatpush1.bf16.msra.mxu0 %v734
        %750 = vmatprep.subr.bf16.mxu0 0
        %751 = vmatpush1.bf16.msra.mxu0 %v727
        %752 = vmatprep.subr.bf16.mxu0 0
        %753 = vmatpush1.bf16.msra.mxu0 %v729
        %754 = vmatprep.subr.bf16.mxu0 0
        %755 = vmatpush1.bf16.msra.mxu0 %v744
        %756 = vmatprep.subr.bf16.mxu0 0
        %757 = vmatpush1.bf16.msra.mxu0 0
        %758 = vmatprep.subr.bf16.mxu0 0
        %759 = vmatpush1.bf16.msra.mxu0 0
        %760 = vmatprep.subr.bf16.mxu0 0
        %761 = vmatpush1.bf16.msra.mxu0 0
        %762 = vmatprep.subr.bf16.mxu0 0
        %763 = vmatpush1.bf16.msra.mxu0 0
        %764 = vmatprep.subr.bf16.mxu0 0
        %765 = vmatpush1.bf16.msra.mxu0 0
        %766 = vmatprep.subr.bf16.mxu0 0
        %767 = vmatpush1.bf16.msra.mxu0 0
        %768 = vmatprep.subr.bf16.mxu0 0
        %769 = vmatpush1.bf16.msra.mxu0 0
        %770 = vmatprep.subr.bf16.mxu0 0
        %771 = vmatpush1.bf16.msra.mxu0 0
        %772 = vmatprep.subr.bf16.mxu0 0
        %773 = vmatpush1.bf16.msra.mxu0 0
        %774 = vmatprep.subr.bf16.mxu0 0
        %775 = vmatpush1.bf16.msra.mxu0 0
        %776 = vmatprep.subr.bf16.mxu0 0
        %777 = vmatpush1.bf16.msra.mxu0 0
        %778 = vmatprep.mubr.bf16.mxu0 0
        %779 = vmatmul.mubr.bf16.gmra.mrb[0].mxu0 %v741
        %v780 = vpop.f32.mrb[0].mxu0
        %v781 = vadd.f32 %v710, %v780
        %v782 = vpop.f32.mrb[0].mxu0
        %v783 = vpop.f32.mrb[0].mxu0
        %v784 = vpop.f32.mrb[0].mxu0
        %785 = vdwg.mxu0
        %vm786 = vcmp.gt.f32.partialorder %v781, 0.0
        %v787 = vmul.f32 %v781, 0.2
        %v788 = vsel %vm786, %v781, %v787
        %v789 = vadd.f32 %v788, %v459
        %v790 = vmul.f32 %v789, 0.5
        %v791 = vpack.c.bf16 %v790, %v790
        %792 = vst.msk [vmem:[%s345] sm:$0xf] %vm554, %v791
        %s793 = sand.u32 %s226, 1
        %s794 = scalar_lea.sflag [#allocation4], %s793
        %s795 = sand.u32 %s226, 1
        %s796 = smul.addr %s795, 4
        %s797 = scalar_lea.vmem [#allocation3], %s796
        // Predicated region
        $region53: #{tpu_custom_call.1} parent=51 // pred_check
          %p798 = pneg %p236
        $region54: #{tpu_custom_call.1} parent=51 // pred_check_branch
          %800 = sbr.rel (%p798) target = $region56
        $region55: #{tpu_custom_call.1} parent=51 // pred_region
          %s802 = ssub.s32 64, 64
          %803 = vsyncadd %s794, %s802
          %s804 = sadd.s32 %s27, %s26
          %s805 = smul.addr %s804, 64
          %s806 = scalar_lea.hbm %s8, %s805
          %s808 = sshll.u32 %s797, 4
          %s809 = int_to_ptr.vmem [resolvable:$true] %s808
          %811 = dma.vmem_to_hbm [thread:$0]  %s809, 64, %s806, %s794
        $region56: #{tpu_custom_call.1} parent=51 // pred_fallthru
          _
      $region52: #{tpu_custom_call.1} parent=5 // pred_fallthru
        _
      %p812 = scmp.le.s32.totalorder 2, %s17
      // Predicated region
      $region57: #{tpu_custom_call.1} parent=5 // pred_check
        %p813 = pneg %p812
      $region58: #{tpu_custom_call.1} parent=5 // pred_check_branch
        %815 = sbr.rel (%p813) target = $region60
      $region59: #{tpu_custom_call.1} parent=5 // pred_region
        %s816 = ssub.s32 %s17, 2
        // Predicated region
        $region61: #{tpu_custom_call.1} parent=59 // pred_check
          %p817 = pneg %p242
        $region62: #{tpu_custom_call.1} parent=59 // pred_check_branch
          %819 = sbr.rel (%p817) target = $region64
        $region63: #{tpu_custom_call.1} parent=59 // pred_region
          %s820 = sand.u32 %s227, 1
          %s821 = scalar_lea.sflag [#allocation4], %s820
          %s822 = sand.u32 %s227, 1
          %s823 = smul.addr %s822, 4
          %s824 = scalar_lea.vmem [#allocation3], %s823
          %825 = dma.done %s821, 64
        $region64: #{tpu_custom_call.1} parent=59 // pred_fallthru
          _
      $region60: #{tpu_custom_call.1} parent=5 // pred_fallthru
        _
    $region6: #{tpu_custom_call.1} parent=1 // loop_footer
      %s21 = sadd.s32 1, %s17
    $region7: #{tpu_custom_call.1} parent=1 // loop_footer_branch
      %16 = sbr.rel target = $region3
    $region8: #{tpu_custom_call.1} parent=1 // loop_exit
      _
    %826 = vsyncpa [#allocation4], 1
    %s827 = scalar_lea.sflag [#allocation4], 1
    %828 = vsyncpa %s827, 1

</llo_original>
